<compile_context>
chip_gen: v6e
topology: v6e:2x2x1
jax: 0.10.0
libtpu: 0.0.40
codegen_flags: <defaults>
</compile_context>

<pallas_src>
import functools

import jax
import jax.numpy as jnp
from jax import lax
from jax.experimental import pallas as pl
from jax.experimental.pallas import tpu as pltpu

_LANE = 128
_SUBLANE = 8


def _bigram_kernel(idx_sref, *args, tn, v, n_valid, compute_loss):
    """One grid step processes TN rows.

    idx_sref  : (N_pad,) int32 SMEM     scalar-prefetched token ids
    tgt_ref   : (TN, 1) int32 VMEM      (only when compute_loss)
    table_hbm : (V_pad, V_pad) f32 HBM  untiled (memory_space=pl.ANY)
    logits_ref: (TN, V_pad) f32 VMEM    output tile
    nll_ref   : (TN, 1) f32 VMEM        output tile (only when compute_loss)
    row_buf   : (TN, V_pad) f32 VMEM    scratch (gather destination)
    sem       : (TN,) DMA semaphores    scratch
    """
    if compute_loss:
        tgt_ref, table_hbm, logits_ref, nll_ref, row_buf, sem = args
    else:
        table_hbm, logits_ref, row_buf, sem = args

    t = pl.program_id(0)
    base = t * tn

    # ---- Embedding lookup: DMA-gather TN table rows from HBM. ----
    copies = []
    for r in range(tn):                          # static unroll, tn is small
        tok = idx_sref[base + r]                 # SMEM scalar read
        cp = pltpu.make_async_copy(table_hbm.at[tok], row_buf.at[r], sem.at[r])
        cp.start()
        copies.append(cp)
    for cp in copies:
        cp.wait()

    rows = row_buf[...]                          # (tn, V_pad) f32
    logits_ref[...] = rows                       # lane-dense store

    if not compute_loss:
        return

    # ---- Cross entropy: nll = logsumexp(row) - row[target]. ----
    v_pad = rows.shape[-1]
    col = lax.broadcasted_iota(jnp.int32, (tn, v_pad), 1)
    masked = jnp.where(col < v, rows, jnp.float32(-1e30))     # mask pad columns
    m = jnp.max(masked, axis=-1, keepdims=True)               # (tn, 1)
    lse = m + jnp.log(jnp.sum(jnp.exp(masked - m), axis=-1, keepdims=True))

    tgt = tgt_ref[...]                                        # (tn, 1) int32
    # select-reduce instead of a second one-hot matmul / f32 temporary
    picked = jnp.sum(jnp.where(col == tgt, rows, 0.0),
                     axis=-1, keepdims=True)                  # (tn, 1)

    row_id = base + lax.broadcasted_iota(jnp.int32, (tn, 1), 0)
    nll_ref[...] = jnp.where(row_id < n_valid, lse - picked, 0.0)


def bigram_forward(idx, table, targets=None, *, tile_rows=8):
    """Matches BigramLangModel.forward.

    Returns (logits, loss):
      * targets is None -> logits shaped (B, T, V), loss is None
      * otherwise       -> logits shaped (B*T, V),  loss is the scalar mean CE
    """
    B, T = idx.shape
    V = table.shape[0]
    N = B * T
    compute_loss = targets is not None

    V_pad = ((V + _LANE - 1) // _LANE) * _LANE
    TN = max(_SUBLANE,
             (min(tile_rows, N) + _SUBLANE - 1) // _SUBLANE * _SUBLANE)
    N_pad = ((N + TN - 1) // TN) * TN
    num_tiles = N_pad // TN

    table_p = jnp.pad(table.astype(jnp.float32),
                      ((0, V_pad - V), (0, V_pad - V)))
    idx_flat = jnp.pad(idx.reshape(N).astype(jnp.int32), (0, N_pad - N))

    inputs = [idx_flat]
    in_specs = []
    if compute_loss:
        tgt_flat = jnp.pad(targets.reshape(N).astype(jnp.int32),
                           (0, N_pad - N)).reshape(N_pad, 1)
        in_specs.append(pl.BlockSpec((TN, 1), lambda t, idx_ref: (t, 0)))
        inputs.append(tgt_flat)
    in_specs.append(pl.BlockSpec(memory_space=pl.ANY))   # table stays in HBM
    inputs.append(table_p)

    logits_shape = jax.ShapeDtypeStruct((N_pad, V_pad), jnp.float32)
    logits_spec = pl.BlockSpec((TN, V_pad), lambda t, idx_ref: (t, 0))
    if compute_loss:
        out_shape = (logits_shape,
                     jax.ShapeDtypeStruct((N_pad, 1), jnp.float32))
        out_specs = (logits_spec,
                     pl.BlockSpec((TN, 1), lambda t, idx_ref: (t, 0)))
    else:
        out_shape = logits_shape
        out_specs = logits_spec

    grid_spec = pltpu.PrefetchScalarGridSpec(
        num_scalar_prefetch=1,
        grid=(num_tiles,),
        in_specs=in_specs,
        out_specs=out_specs,
        scratch_shapes=[
            pltpu.VMEM((TN, V_pad), jnp.float32),
            pltpu.SemaphoreType.DMA((TN,)),
        ],
    )

    cost = pl.CostEstimate(
        flops=8 * N_pad * V_pad,
        transcendentals=(N_pad * V_pad + N_pad) if compute_loss else 0,
        bytes_accessed=2 * N_pad * V_pad * 4 + 3 * N_pad * 4,
    )

    kernel = functools.partial(
        _bigram_kernel, tn=TN, v=V, n_valid=N, compute_loss=compute_loss)

    outs = pl.pallas_call(
        kernel,
        grid_spec=grid_spec,
        out_shape=out_shape,
        compiler_params=pltpu.CompilerParams(
            dimension_semantics=("parallel",),
        ),
        cost_estimate=cost,
    )(*inputs)

    if compute_loss:
        logits_pad, nll = outs
        logits = logits_pad[:N, :V]                 # (B*T, V), as in PyTorch
        loss = jnp.sum(nll) / jnp.float32(N)        # padded rows contribute 0
        return logits, loss
    else:
        logits = outs[:N, :V].reshape(B, T, V)
        return logits, None


if __name__ == "__main__":
    # Deterministic setup, small shapes: vocab=65 (char-level), batch=2, seq=8.
    V, B, T = 65, 2, 8
    key = jax.random.PRNGKey(0)
    k_tab, k_idx, k_tgt = jax.random.split(key, 3)

    # nn.Embedding default init: N(0, 1).
    table = jax.random.normal(k_tab, (V, V), dtype=jnp.float32)
    idx = jax.random.randint(k_idx, (B, T), 0, V, dtype=jnp.int32)
    targets = jax.random.randint(k_tgt, (B, T), 0, V, dtype=jnp.int32)

    # Training path (targets given): logits (B*T, V), scalar loss.
    logits, loss = bigram_forward(idx, table, targets)
    jax.block_until_ready((logits, loss))

    # Pure-JAX reference (embedding gather + mean cross-entropy).
    ref_logits = table[idx]                               # (B, T, V)
    rl = ref_logits.reshape(B * T, V)
    rt = targets.reshape(B * T)
    ref_loss = jnp.mean(
        jax.nn.logsumexp(rl, axis=-1) - rl[jnp.arange(B * T), rt])

    assert logits.shape == (B * T, V)
    assert jnp.allclose(logits, rl, atol=1e-5)
    assert jnp.allclose(loss, ref_loss, atol=1e-5)

    # Inference path (targets=None): logits (B, T, V), no loss, no CE work.
    logits2, loss2 = bigram_forward(idx, table)
    jax.block_until_ready(logits2)
    assert loss2 is None
    assert logits2.shape == (B, T, V)
    assert jnp.allclose(logits2, ref_logits, atol=1e-5)

    print("KERNEL_OK")
</pallas_src>

<mosaic_0001>
module attributes {stable_mosaic.version = 11 : i64} {
  func.func @_bigram_kernel(%arg0: i32, %arg1: memref<16xi32, #tpu.memory_space<smem>>, %arg2: memref<8x1xi32, #tpu.memory_space<vmem>>, %arg3: memref<128x128xf32, #tpu.memory_space<any>>, %arg4: memref<8x128xf32, #tpu.memory_space<vmem>>, %arg5: memref<8x1xf32, #tpu.memory_space<vmem>>, %arg6: memref<8x128xf32, #tpu.memory_space<vmem>>, %arg7: memref<8x!tpu.dma_semaphore, #tpu.memory_space<semaphore_mem>>) attributes {dimension_semantics = [#tpu.dimension_semantics<parallel>], iteration_bounds = array<i64: 2>, scalar_prefetch = 1 : i64, scratch_operands = 2 : i64, tpu.core_type = #tpu.core_type<tc>, window_params = [{transform_indices = @transform_0, window_bounds = array<i64: 8, 1>}, {}, {transform_indices = @transform_2, window_bounds = array<i64: 8, 128>}, {transform_indices = @transform_3, window_bounds = array<i64: 8, 1>}]} {
    %c8_i32 = arith.constant 8 : i32
    %0 = arith.muli %arg0, %c8_i32 : i32
    %c0_i32 = arith.constant 0 : i32
    %1 = arith.addi %0, %c0_i32 : i32
    %2 = arith.index_cast %1 : i32 to index
    %3 = memref.load %arg1[%2] : memref<16xi32, #tpu.memory_space<smem>>
    %c0_i32_0 = arith.constant 0 : i32
    %c0_i32_1 = arith.constant 0 : i32
    %c0_i32_2 = arith.constant 0 : i32
    %4 = tpu.memref_slice %arg3[%3, %c0_i32_2] : memref<128x128xf32, #tpu.memory_space<any>> -> memref<1x128xf32, #tpu.memory_space<any>>
    %5 = tpu.memref_squeeze %4 : memref<1x128xf32, #tpu.memory_space<any>> -> memref<128xf32, #tpu.memory_space<any>>
    %c0_i32_3 = arith.constant 0 : i32
    %6 = tpu.memref_slice %arg6[%c0_i32_0, %c0_i32_3] : memref<8x128xf32, #tpu.memory_space<vmem>> -> memref<1x128xf32, #tpu.memory_space<vmem>>
    %7 = tpu.memref_squeeze %6 : memref<1x128xf32, #tpu.memory_space<vmem>> -> memref<128xf32, #tpu.memory_space<vmem>>
    %8 = tpu.memref_slice %arg7[%c0_i32_1] : memref<8x!tpu.dma_semaphore, #tpu.memory_space<semaphore_mem>> -> memref<1x!tpu.dma_semaphore, #tpu.memory_space<semaphore_mem>>
    %9 = tpu.memref_squeeze %8 : memref<1x!tpu.dma_semaphore, #tpu.memory_space<semaphore_mem>> -> memref<!tpu.dma_semaphore, #tpu.memory_space<semaphore_mem>>
    tpu.enqueue_dma source(%5 : memref<128xf32, #tpu.memory_space<any>>) target(%7 : memref<128xf32, #tpu.memory_space<vmem>>) target_semaphore(%9 : memref<!tpu.dma_semaphore, #tpu.memory_space<semaphore_mem>>)
    %c1_i32 = arith.constant 1 : i32
    %10 = arith.addi %0, %c1_i32 : i32
    %11 = arith.index_cast %10 : i32 to index
    %12 = memref.load %arg1[%11] : memref<16xi32, #tpu.memory_space<smem>>
    %c1_i32_4 = arith.constant 1 : i32
    %c1_i32_5 = arith.constant 1 : i32
    %c0_i32_6 = arith.constant 0 : i32
    %13 = tpu.memref_slice %arg3[%12, %c0_i32_6] : memref<128x128xf32, #tpu.memory_space<any>> -> memref<1x128xf32, #tpu.memory_space<any>>
    %14 = tpu.memref_squeeze %13 : memref<1x128xf32, #tpu.memory_space<any>> -> memref<128xf32, #tpu.memory_space<any>>
    %c0_i32_7 = arith.constant 0 : i32
    %15 = tpu.memref_slice %arg6[%c1_i32_4, %c0_i32_7] : memref<8x128xf32, #tpu.memory_space<vmem>> -> memref<1x128xf32, #tpu.memory_space<vmem>>
    %16 = tpu.memref_squeeze %15 : memref<1x128xf32, #tpu.memory_space<vmem>> -> memref<128xf32, #tpu.memory_space<vmem>>
    %17 = tpu.memref_slice %arg7[%c1_i32_5] : memref<8x!tpu.dma_semaphore, #tpu.memory_space<semaphore_mem>> -> memref<1x!tpu.dma_semaphore, #tpu.memory_space<semaphore_mem>>
    %18 = tpu.memref_squeeze %17 : memref<1x!tpu.dma_semaphore, #tpu.memory_space<semaphore_mem>> -> memref<!tpu.dma_semaphore, #tpu.memory_space<semaphore_mem>>
    tpu.enqueue_dma source(%14 : memref<128xf32, #tpu.memory_space<any>>) target(%16 : memref<128xf32, #tpu.memory_space<vmem>>) target_semaphore(%18 : memref<!tpu.dma_semaphore, #tpu.memory_space<semaphore_mem>>)
    %c2_i32 = arith.constant 2 : i32
    %19 = arith.addi %0, %c2_i32 : i32
    %20 = arith.index_cast %19 : i32 to index
    %21 = memref.load %arg1[%20] : memref<16xi32, #tpu.memory_space<smem>>
    %c2_i32_8 = arith.constant 2 : i32
    %c2_i32_9 = arith.constant 2 : i32
    %c0_i32_10 = arith.constant 0 : i32
    %22 = tpu.memref_slice %arg3[%21, %c0_i32_10] : memref<128x128xf32, #tpu.memory_space<any>> -> memref<1x128xf32, #tpu.memory_space<any>>
    %23 = tpu.memref_squeeze %22 : memref<1x128xf32, #tpu.memory_space<any>> -> memref<128xf32, #tpu.memory_space<any>>
    %c0_i32_11 = arith.constant 0 : i32
    %24 = tpu.memref_slice %arg6[%c2_i32_8, %c0_i32_11] : memref<8x128xf32, #tpu.memory_space<vmem>> -> memref<1x128xf32, #tpu.memory_space<vmem>>
    %25 = tpu.memref_squeeze %24 : memref<1x128xf32, #tpu.memory_space<vmem>> -> memref<128xf32, #tpu.memory_space<vmem>>
    %26 = tpu.memref_slice %arg7[%c2_i32_9] : memref<8x!tpu.dma_semaphore, #tpu.memory_space<semaphore_mem>> -> memref<1x!tpu.dma_semaphore, #tpu.memory_space<semaphore_mem>>
    %27 = tpu.memref_squeeze %26 : memref<1x!tpu.dma_semaphore, #tpu.memory_space<semaphore_mem>> -> memref<!tpu.dma_semaphore, #tpu.memory_space<semaphore_mem>>
    tpu.enqueue_dma source(%23 : memref<128xf32, #tpu.memory_space<any>>) target(%25 : memref<128xf32, #tpu.memory_space<vmem>>) target_semaphore(%27 : memref<!tpu.dma_semaphore, #tpu.memory_space<semaphore_mem>>)
    %c3_i32 = arith.constant 3 : i32
    %28 = arith.addi %0, %c3_i32 : i32
    %29 = arith.index_cast %28 : i32 to index
    %30 = memref.load %arg1[%29] : memref<16xi32, #tpu.memory_space<smem>>
    %c3_i32_12 = arith.constant 3 : i32
    %c3_i32_13 = arith.constant 3 : i32
    %c0_i32_14 = arith.constant 0 : i32
    %31 = tpu.memref_slice %arg3[%30, %c0_i32_14] : memref<128x128xf32, #tpu.memory_space<any>> -> memref<1x128xf32, #tpu.memory_space<any>>
    %32 = tpu.memref_squeeze %31 : memref<1x128xf32, #tpu.memory_space<any>> -> memref<128xf32, #tpu.memory_space<any>>
    %c0_i32_15 = arith.constant 0 : i32
    %33 = tpu.memref_slice %arg6[%c3_i32_12, %c0_i32_15] : memref<8x128xf32, #tpu.memory_space<vmem>> -> memref<1x128xf32, #tpu.memory_space<vmem>>
    %34 = tpu.memref_squeeze %33 : memref<1x128xf32, #tpu.memory_space<vmem>> -> memref<128xf32, #tpu.memory_space<vmem>>
    %35 = tpu.memref_slice %arg7[%c3_i32_13] : memref<8x!tpu.dma_semaphore, #tpu.memory_space<semaphore_mem>> -> memref<1x!tpu.dma_semaphore, #tpu.memory_space<semaphore_mem>>
    %36 = tpu.memref_squeeze %35 : memref<1x!tpu.dma_semaphore, #tpu.memory_space<semaphore_mem>> -> memref<!tpu.dma_semaphore, #tpu.memory_space<semaphore_mem>>
    tpu.enqueue_dma source(%32 : memref<128xf32, #tpu.memory_space<any>>) target(%34 : memref<128xf32, #tpu.memory_space<vmem>>) target_semaphore(%36 : memref<!tpu.dma_semaphore, #tpu.memory_space<semaphore_mem>>)
    %c4_i32 = arith.constant 4 : i32
    %37 = arith.addi %0, %c4_i32 : i32
    %38 = arith.index_cast %37 : i32 to index
    %39 = memref.load %arg1[%38] : memref<16xi32, #tpu.memory_space<smem>>
    %c4_i32_16 = arith.constant 4 : i32
    %c4_i32_17 = arith.constant 4 : i32
    %c0_i32_18 = arith.constant 0 : i32
    %40 = tpu.memref_slice %arg3[%39, %c0_i32_18] : memref<128x128xf32, #tpu.memory_space<any>> -> memref<1x128xf32, #tpu.memory_space<any>>
    %41 = tpu.memref_squeeze %40 : memref<1x128xf32, #tpu.memory_space<any>> -> memref<128xf32, #tpu.memory_space<any>>
    %c0_i32_19 = arith.constant 0 : i32
    %42 = tpu.memref_slice %arg6[%c4_i32_16, %c0_i32_19] : memref<8x128xf32, #tpu.memory_space<vmem>> -> memref<1x128xf32, #tpu.memory_space<vmem>>
    %43 = tpu.memref_squeeze %42 : memref<1x128xf32, #tpu.memory_space<vmem>> -> memref<128xf32, #tpu.memory_space<vmem>>
    %44 = tpu.memref_slice %arg7[%c4_i32_17] : memref<8x!tpu.dma_semaphore, #tpu.memory_space<semaphore_mem>> -> memref<1x!tpu.dma_semaphore, #tpu.memory_space<semaphore_mem>>
    %45 = tpu.memref_squeeze %44 : memref<1x!tpu.dma_semaphore, #tpu.memory_space<semaphore_mem>> -> memref<!tpu.dma_semaphore, #tpu.memory_space<semaphore_mem>>
    tpu.enqueue_dma source(%41 : memref<128xf32, #tpu.memory_space<any>>) target(%43 : memref<128xf32, #tpu.memory_space<vmem>>) target_semaphore(%45 : memref<!tpu.dma_semaphore, #tpu.memory_space<semaphore_mem>>)
    %c5_i32 = arith.constant 5 : i32
    %46 = arith.addi %0, %c5_i32 : i32
    %47 = arith.index_cast %46 : i32 to index
    %48 = memref.load %arg1[%47] : memref<16xi32, #tpu.memory_space<smem>>
    %c5_i32_20 = arith.constant 5 : i32
    %c5_i32_21 = arith.constant 5 : i32
    %c0_i32_22 = arith.constant 0 : i32
    %49 = tpu.memref_slice %arg3[%48, %c0_i32_22] : memref<128x128xf32, #tpu.memory_space<any>> -> memref<1x128xf32, #tpu.memory_space<any>>
    %50 = tpu.memref_squeeze %49 : memref<1x128xf32, #tpu.memory_space<any>> -> memref<128xf32, #tpu.memory_space<any>>
    %c0_i32_23 = arith.constant 0 : i32
    %51 = tpu.memref_slice %arg6[%c5_i32_20, %c0_i32_23] : memref<8x128xf32, #tpu.memory_space<vmem>> -> memref<1x128xf32, #tpu.memory_space<vmem>>
    %52 = tpu.memref_squeeze %51 : memref<1x128xf32, #tpu.memory_space<vmem>> -> memref<128xf32, #tpu.memory_space<vmem>>
    %53 = tpu.memref_slice %arg7[%c5_i32_21] : memref<8x!tpu.dma_semaphore, #tpu.memory_space<semaphore_mem>> -> memref<1x!tpu.dma_semaphore, #tpu.memory_space<semaphore_mem>>
    %54 = tpu.memref_squeeze %53 : memref<1x!tpu.dma_semaphore, #tpu.memory_space<semaphore_mem>> -> memref<!tpu.dma_semaphore, #tpu.memory_space<semaphore_mem>>
    tpu.enqueue_dma source(%50 : memref<128xf32, #tpu.memory_space<any>>) target(%52 : memref<128xf32, #tpu.memory_space<vmem>>) target_semaphore(%54 : memref<!tpu.dma_semaphore, #tpu.memory_space<semaphore_mem>>)
    %c6_i32 = arith.constant 6 : i32
    %55 = arith.addi %0, %c6_i32 : i32
    %56 = arith.index_cast %55 : i32 to index
    %57 = memref.load %arg1[%56] : memref<16xi32, #tpu.memory_space<smem>>
    %c6_i32_24 = arith.constant 6 : i32
    %c6_i32_25 = arith.constant 6 : i32
    %c0_i32_26 = arith.constant 0 : i32
    %58 = tpu.memref_slice %arg3[%57, %c0_i32_26] : memref<128x128xf32, #tpu.memory_space<any>> -> memref<1x128xf32, #tpu.memory_space<any>>
    %59 = tpu.memref_squeeze %58 : memref<1x128xf32, #tpu.memory_space<any>> -> memref<128xf32, #tpu.memory_space<any>>
    %c0_i32_27 = arith.constant 0 : i32
    %60 = tpu.memref_slice %arg6[%c6_i32_24, %c0_i32_27] : memref<8x128xf32, #tpu.memory_space<vmem>> -> memref<1x128xf32, #tpu.memory_space<vmem>>
    %61 = tpu.memref_squeeze %60 : memref<1x128xf32, #tpu.memory_space<vmem>> -> memref<128xf32, #tpu.memory_space<vmem>>
    %62 = tpu.memref_slice %arg7[%c6_i32_25] : memref<8x!tpu.dma_semaphore, #tpu.memory_space<semaphore_mem>> -> memref<1x!tpu.dma_semaphore, #tpu.memory_space<semaphore_mem>>
    %63 = tpu.memref_squeeze %62 : memref<1x!tpu.dma_semaphore, #tpu.memory_space<semaphore_mem>> -> memref<!tpu.dma_semaphore, #tpu.memory_space<semaphore_mem>>
    tpu.enqueue_dma source(%59 : memref<128xf32, #tpu.memory_space<any>>) target(%61 : memref<128xf32, #tpu.memory_space<vmem>>) target_semaphore(%63 : memref<!tpu.dma_semaphore, #tpu.memory_space<semaphore_mem>>)
    %c7_i32 = arith.constant 7 : i32
    %64 = arith.addi %0, %c7_i32 : i32
    %65 = arith.index_cast %64 : i32 to index
    %66 = memref.load %arg1[%65] : memref<16xi32, #tpu.memory_space<smem>>
    %c7_i32_28 = arith.constant 7 : i32
    %c7_i32_29 = arith.constant 7 : i32
    %c0_i32_30 = arith.constant 0 : i32
    %67 = tpu.memref_slice %arg3[%66, %c0_i32_30] : memref<128x128xf32, #tpu.memory_space<any>> -> memref<1x128xf32, #tpu.memory_space<any>>
    %68 = tpu.memref_squeeze %67 : memref<1x128xf32, #tpu.memory_space<any>> -> memref<128xf32, #tpu.memory_space<any>>
    %c0_i32_31 = arith.constant 0 : i32
    %69 = tpu.memref_slice %arg6[%c7_i32_28, %c0_i32_31] : memref<8x128xf32, #tpu.memory_space<vmem>> -> memref<1x128xf32, #tpu.memory_space<vmem>>
    %70 = tpu.memref_squeeze %69 : memref<1x128xf32, #tpu.memory_space<vmem>> -> memref<128xf32, #tpu.memory_space<vmem>>
    %71 = tpu.memref_slice %arg7[%c7_i32_29] : memref<8x!tpu.dma_semaphore, #tpu.memory_space<semaphore_mem>> -> memref<1x!tpu.dma_semaphore, #tpu.memory_space<semaphore_mem>>
    %72 = tpu.memref_squeeze %71 : memref<1x!tpu.dma_semaphore, #tpu.memory_space<semaphore_mem>> -> memref<!tpu.dma_semaphore, #tpu.memory_space<semaphore_mem>>
    tpu.enqueue_dma source(%68 : memref<128xf32, #tpu.memory_space<any>>) target(%70 : memref<128xf32, #tpu.memory_space<vmem>>) target_semaphore(%72 : memref<!tpu.dma_semaphore, #tpu.memory_space<semaphore_mem>>)
    %c0_i32_32 = arith.constant 0 : i32
    %c0_i32_33 = arith.constant 0 : i32
    %c0_i32_34 = arith.constant 0 : i32
    %73 = tpu.memref_slice %arg3[%3, %c0_i32_34] : memref<128x128xf32, #tpu.memory_space<any>> -> memref<1x128xf32, #tpu.memory_space<any>>
    %74 = tpu.memref_squeeze %73 : memref<1x128xf32, #tpu.memory_space<any>> -> memref<128xf32, #tpu.memory_space<any>>
    %c0_i32_35 = arith.constant 0 : i32
    %75 = tpu.memref_slice %arg6[%c0_i32_32, %c0_i32_35] : memref<8x128xf32, #tpu.memory_space<vmem>> -> memref<1x128xf32, #tpu.memory_space<vmem>>
    %76 = tpu.memref_squeeze %75 : memref<1x128xf32, #tpu.memory_space<vmem>> -> memref<128xf32, #tpu.memory_space<vmem>>
    %77 = tpu.memref_slice %arg7[%c0_i32_33] : memref<8x!tpu.dma_semaphore, #tpu.memory_space<semaphore_mem>> -> memref<1x!tpu.dma_semaphore, #tpu.memory_space<semaphore_mem>>
    %78 = tpu.memref_squeeze %77 : memref<1x!tpu.dma_semaphore, #tpu.memory_space<semaphore_mem>> -> memref<!tpu.dma_semaphore, #tpu.memory_space<semaphore_mem>>
    tpu.wait_dma2 semaphore(%78 : memref<!tpu.dma_semaphore, #tpu.memory_space<semaphore_mem>>) src(%74 : memref<128xf32, #tpu.memory_space<any>>) dst(%76 : memref<128xf32, #tpu.memory_space<vmem>>)
    %c1_i32_36 = arith.constant 1 : i32
    %c1_i32_37 = arith.constant 1 : i32
    %c0_i32_38 = arith.constant 0 : i32
    %79 = tpu.memref_slice %arg3[%12, %c0_i32_38] : memref<128x128xf32, #tpu.memory_space<any>> -> memref<1x128xf32, #tpu.memory_space<any>>
    %80 = tpu.memref_squeeze %79 : memref<1x128xf32, #tpu.memory_space<any>> -> memref<128xf32, #tpu.memory_space<any>>
    %c0_i32_39 = arith.constant 0 : i32
    %81 = tpu.memref_slice %arg6[%c1_i32_36, %c0_i32_39] : memref<8x128xf32, #tpu.memory_space<vmem>> -> memref<1x128xf32, #tpu.memory_space<vmem>>
    %82 = tpu.memref_squeeze %81 : memref<1x128xf32, #tpu.memory_space<vmem>> -> memref<128xf32, #tpu.memory_space<vmem>>
    %83 = tpu.memref_slice %arg7[%c1_i32_37] : memref<8x!tpu.dma_semaphore, #tpu.memory_space<semaphore_mem>> -> memref<1x!tpu.dma_semaphore, #tpu.memory_space<semaphore_mem>>
    %84 = tpu.memref_squeeze %83 : memref<1x!tpu.dma_semaphore, #tpu.memory_space<semaphore_mem>> -> memref<!tpu.dma_semaphore, #tpu.memory_space<semaphore_mem>>
    tpu.wait_dma2 semaphore(%84 : memref<!tpu.dma_semaphore, #tpu.memory_space<semaphore_mem>>) src(%80 : memref<128xf32, #tpu.memory_space<any>>) dst(%82 : memref<128xf32, #tpu.memory_space<vmem>>)
    %c2_i32_40 = arith.constant 2 : i32
    %c2_i32_41 = arith.constant 2 : i32
    %c0_i32_42 = arith.constant 0 : i32
    %85 = tpu.memref_slice %arg3[%21, %c0_i32_42] : memref<128x128xf32, #tpu.memory_space<any>> -> memref<1x128xf32, #tpu.memory_space<any>>
    %86 = tpu.memref_squeeze %85 : memref<1x128xf32, #tpu.memory_space<any>> -> memref<128xf32, #tpu.memory_space<any>>
    %c0_i32_43 = arith.constant 0 : i32
    %87 = tpu.memref_slice %arg6[%c2_i32_40, %c0_i32_43] : memref<8x128xf32, #tpu.memory_space<vmem>> -> memref<1x128xf32, #tpu.memory_space<vmem>>
    %88 = tpu.memref_squeeze %87 : memref<1x128xf32, #tpu.memory_space<vmem>> -> memref<128xf32, #tpu.memory_space<vmem>>
    %89 = tpu.memref_slice %arg7[%c2_i32_41] : memref<8x!tpu.dma_semaphore, #tpu.memory_space<semaphore_mem>> -> memref<1x!tpu.dma_semaphore, #tpu.memory_space<semaphore_mem>>
    %90 = tpu.memref_squeeze %89 : memref<1x!tpu.dma_semaphore, #tpu.memory_space<semaphore_mem>> -> memref<!tpu.dma_semaphore, #tpu.memory_space<semaphore_mem>>
    tpu.wait_dma2 semaphore(%90 : memref<!tpu.dma_semaphore, #tpu.memory_space<semaphore_mem>>) src(%86 : memref<128xf32, #tpu.memory_space<any>>) dst(%88 : memref<128xf32, #tpu.memory_space<vmem>>)
    %c3_i32_44 = arith.constant 3 : i32
    %c3_i32_45 = arith.constant 3 : i32
    %c0_i32_46 = arith.constant 0 : i32
    %91 = tpu.memref_slice %arg3[%30, %c0_i32_46] : memref<128x128xf32, #tpu.memory_space<any>> -> memref<1x128xf32, #tpu.memory_space<any>>
    %92 = tpu.memref_squeeze %91 : memref<1x128xf32, #tpu.memory_space<any>> -> memref<128xf32, #tpu.memory_space<any>>
    %c0_i32_47 = arith.constant 0 : i32
    %93 = tpu.memref_slice %arg6[%c3_i32_44, %c0_i32_47] : memref<8x128xf32, #tpu.memory_space<vmem>> -> memref<1x128xf32, #tpu.memory_space<vmem>>
    %94 = tpu.memref_squeeze %93 : memref<1x128xf32, #tpu.memory_space<vmem>> -> memref<128xf32, #tpu.memory_space<vmem>>
    %95 = tpu.memref_slice %arg7[%c3_i32_45] : memref<8x!tpu.dma_semaphore, #tpu.memory_space<semaphore_mem>> -> memref<1x!tpu.dma_semaphore, #tpu.memory_space<semaphore_mem>>
    %96 = tpu.memref_squeeze %95 : memref<1x!tpu.dma_semaphore, #tpu.memory_space<semaphore_mem>> -> memref<!tpu.dma_semaphore, #tpu.memory_space<semaphore_mem>>
    tpu.wait_dma2 semaphore(%96 : memref<!tpu.dma_semaphore, #tpu.memory_space<semaphore_mem>>) src(%92 : memref<128xf32, #tpu.memory_space<any>>) dst(%94 : memref<128xf32, #tpu.memory_space<vmem>>)
    %c4_i32_48 = arith.constant 4 : i32
    %c4_i32_49 = arith.constant 4 : i32
    %c0_i32_50 = arith.constant 0 : i32
    %97 = tpu.memref_slice %arg3[%39, %c0_i32_50] : memref<128x128xf32, #tpu.memory_space<any>> -> memref<1x128xf32, #tpu.memory_space<any>>
    %98 = tpu.memref_squeeze %97 : memref<1x128xf32, #tpu.memory_space<any>> -> memref<128xf32, #tpu.memory_space<any>>
    %c0_i32_51 = arith.constant 0 : i32
    %99 = tpu.memref_slice %arg6[%c4_i32_48, %c0_i32_51] : memref<8x128xf32, #tpu.memory_space<vmem>> -> memref<1x128xf32, #tpu.memory_space<vmem>>
    %100 = tpu.memref_squeeze %99 : memref<1x128xf32, #tpu.memory_space<vmem>> -> memref<128xf32, #tpu.memory_space<vmem>>
    %101 = tpu.memref_slice %arg7[%c4_i32_49] : memref<8x!tpu.dma_semaphore, #tpu.memory_space<semaphore_mem>> -> memref<1x!tpu.dma_semaphore, #tpu.memory_space<semaphore_mem>>
    %102 = tpu.memref_squeeze %101 : memref<1x!tpu.dma_semaphore, #tpu.memory_space<semaphore_mem>> -> memref<!tpu.dma_semaphore, #tpu.memory_space<semaphore_mem>>
    tpu.wait_dma2 semaphore(%102 : memref<!tpu.dma_semaphore, #tpu.memory_space<semaphore_mem>>) src(%98 : memref<128xf32, #tpu.memory_space<any>>) dst(%100 : memref<128xf32, #tpu.memory_space<vmem>>)
    %c5_i32_52 = arith.constant 5 : i32
    %c5_i32_53 = arith.constant 5 : i32
    %c0_i32_54 = arith.constant 0 : i32
    %103 = tpu.memref_slice %arg3[%48, %c0_i32_54] : memref<128x128xf32, #tpu.memory_space<any>> -> memref<1x128xf32, #tpu.memory_space<any>>
    %104 = tpu.memref_squeeze %103 : memref<1x128xf32, #tpu.memory_space<any>> -> memref<128xf32, #tpu.memory_space<any>>
    %c0_i32_55 = arith.constant 0 : i32
    %105 = tpu.memref_slice %arg6[%c5_i32_52, %c0_i32_55] : memref<8x128xf32, #tpu.memory_space<vmem>> -> memref<1x128xf32, #tpu.memory_space<vmem>>
    %106 = tpu.memref_squeeze %105 : memref<1x128xf32, #tpu.memory_space<vmem>> -> memref<128xf32, #tpu.memory_space<vmem>>
    %107 = tpu.memref_slice %arg7[%c5_i32_53] : memref<8x!tpu.dma_semaphore, #tpu.memory_space<semaphore_mem>> -> memref<1x!tpu.dma_semaphore, #tpu.memory_space<semaphore_mem>>
    %108 = tpu.memref_squeeze %107 : memref<1x!tpu.dma_semaphore, #tpu.memory_space<semaphore_mem>> -> memref<!tpu.dma_semaphore, #tpu.memory_space<semaphore_mem>>
    tpu.wait_dma2 semaphore(%108 : memref<!tpu.dma_semaphore, #tpu.memory_space<semaphore_mem>>) src(%104 : memref<128xf32, #tpu.memory_space<any>>) dst(%106 : memref<128xf32, #tpu.memory_space<vmem>>)
    %c6_i32_56 = arith.constant 6 : i32
    %c6_i32_57 = arith.constant 6 : i32
    %c0_i32_58 = arith.constant 0 : i32
    %109 = tpu.memref_slice %arg3[%57, %c0_i32_58] : memref<128x128xf32, #tpu.memory_space<any>> -> memref<1x128xf32, #tpu.memory_space<any>>
    %110 = tpu.memref_squeeze %109 : memref<1x128xf32, #tpu.memory_space<any>> -> memref<128xf32, #tpu.memory_space<any>>
    %c0_i32_59 = arith.constant 0 : i32
    %111 = tpu.memref_slice %arg6[%c6_i32_56, %c0_i32_59] : memref<8x128xf32, #tpu.memory_space<vmem>> -> memref<1x128xf32, #tpu.memory_space<vmem>>
    %112 = tpu.memref_squeeze %111 : memref<1x128xf32, #tpu.memory_space<vmem>> -> memref<128xf32, #tpu.memory_space<vmem>>
    %113 = tpu.memref_slice %arg7[%c6_i32_57] : memref<8x!tpu.dma_semaphore, #tpu.memory_space<semaphore_mem>> -> memref<1x!tpu.dma_semaphore, #tpu.memory_space<semaphore_mem>>
    %114 = tpu.memref_squeeze %113 : memref<1x!tpu.dma_semaphore, #tpu.memory_space<semaphore_mem>> -> memref<!tpu.dma_semaphore, #tpu.memory_space<semaphore_mem>>
    tpu.wait_dma2 semaphore(%114 : memref<!tpu.dma_semaphore, #tpu.memory_space<semaphore_mem>>) src(%110 : memref<128xf32, #tpu.memory_space<any>>) dst(%112 : memref<128xf32, #tpu.memory_space<vmem>>)
    %c7_i32_60 = arith.constant 7 : i32
    %c7_i32_61 = arith.constant 7 : i32
    %c0_i32_62 = arith.constant 0 : i32
    %115 = tpu.memref_slice %arg3[%66, %c0_i32_62] : memref<128x128xf32, #tpu.memory_space<any>> -> memref<1x128xf32, #tpu.memory_space<any>>
    %116 = tpu.memref_squeeze %115 : memref<1x128xf32, #tpu.memory_space<any>> -> memref<128xf32, #tpu.memory_space<any>>
    %c0_i32_63 = arith.constant 0 : i32
    %117 = tpu.memref_slice %arg6[%c7_i32_60, %c0_i32_63] : memref<8x128xf32, #tpu.memory_space<vmem>> -> memref<1x128xf32, #tpu.memory_space<vmem>>
    %118 = tpu.memref_squeeze %117 : memref<1x128xf32, #tpu.memory_space<vmem>> -> memref<128xf32, #tpu.memory_space<vmem>>
    %119 = tpu.memref_slice %arg7[%c7_i32_61] : memref<8x!tpu.dma_semaphore, #tpu.memory_space<semaphore_mem>> -> memref<1x!tpu.dma_semaphore, #tpu.memory_space<semaphore_mem>>
    %120 = tpu.memref_squeeze %119 : memref<1x!tpu.dma_semaphore, #tpu.memory_space<semaphore_mem>> -> memref<!tpu.dma_semaphore, #tpu.memory_space<semaphore_mem>>
    tpu.wait_dma2 semaphore(%120 : memref<!tpu.dma_semaphore, #tpu.memory_space<semaphore_mem>>) src(%116 : memref<128xf32, #tpu.memory_space<any>>) dst(%118 : memref<128xf32, #tpu.memory_space<vmem>>)
    %c0 = arith.constant 0 : index
    %c0_64 = arith.constant 0 : index
    %121 = vector.load %arg6[%c0, %c0_64] : memref<8x128xf32, #tpu.memory_space<vmem>>, vector<8x128xf32>
    %c0_65 = arith.constant 0 : index
    %c0_66 = arith.constant 0 : index
    %122 = vector.load %arg4[%c0_65, %c0_66] : memref<8x128xf32, #tpu.memory_space<vmem>>, vector<8x128xf32>
    tpu.vector_store %arg4[%c0_65, %c0_66], %121 {strides = array<i32>} : memref<8x128xf32, #tpu.memory_space<vmem>>, vector<8x128xf32>,
    %123 = tpu.iota {dimensions = array<i32: 1>} : vector<8x128xi32>
    %c65_i32 = arith.constant 65 : i32
    %124 = vector.broadcast %c65_i32 : i32 to vector<8x128xi32>
    %125 = arith.cmpi slt, %123, %124 : vector<8x128xi32>
    %cst = arith.constant -1.000000e+30 : f32
    %126 = vector.broadcast %cst : f32 to vector<8x128xf32>
    %127 = arith.select %125, %121, %126 : vector<8x128xi1>, vector<8x128xf32>
    %cst_67 = arith.constant dense<0xFF800000> : vector<8xf32>
    %128 = vector.multi_reduction <maximumf>, %127, %cst_67 [1] : vector<8x128xf32> to vector<8xf32>
    %129 = vector.shape_cast %128 : vector<8xf32> to vector<8x1xf32>
    %130 = vector.broadcast %129 : vector<8x1xf32> to vector<8x128xf32>
    %131 = arith.subf %127, %130 : vector<8x128xf32>
    %132 = math.exp %131 : vector<8x128xf32>
    %cst_68 = arith.constant dense<0.000000e+00> : vector<8xf32>
    %133 = vector.multi_reduction <add>, %132, %cst_68 [1] : vector<8x128xf32> to vector<8xf32>
    %134 = vector.shape_cast %133 : vector<8xf32> to vector<8x1xf32>
    %135 = math.log %134 : vector<8x1xf32>
    %136 = arith.addf %129, %135 : vector<8x1xf32>
    %c0_69 = arith.constant 0 : index
    %c0_70 = arith.constant 0 : index
    %137 = vector.load %arg2[%c0_69, %c0_70] : memref<8x1xi32, #tpu.memory_space<vmem>>, vector<8x1xi32>
    %138 = vector.broadcast %137 : vector<8x1xi32> to vector<8x128xi32>
    %139 = arith.cmpi eq, %123, %138 : vector<8x128xi32>
    %cst_71 = arith.constant 0.000000e+00 : f32
    %140 = vector.broadcast %cst_71 : f32 to vector<8x128xf32>
    %141 = arith.select %139, %121, %140 : vector<8x128xi1>, vector<8x128xf32>
    %cst_72 = arith.constant dense<0.000000e+00> : vector<8xf32>
    %142 = vector.multi_reduction <add>, %141, %cst_72 [1] : vector<8x128xf32> to vector<8xf32>
    %143 = vector.shape_cast %142 : vector<8xf32> to vector<8x1xf32>
    %144 = tpu.iota {dimensions = array<i32: 0>} : vector<8x1xi32>
    %145 = vector.broadcast %0 : i32 to vector<8x1xi32>
    %146 = arith.addi %145, %144 : vector<8x1xi32>
    %c16_i32 = arith.constant 16 : i32
    %147 = vector.broadcast %c16_i32 : i32 to vector<8x1xi32>
    %148 = arith.cmpi slt, %146, %147 : vector<8x1xi32>
    %149 = arith.subf %136, %143 : vector<8x1xf32>
    %cst_73 = arith.constant 0.000000e+00 : f32
    %150 = vector.broadcast %cst_73 : f32 to vector<8x1xf32>
    %151 = arith.select %148, %149, %150 : vector<8x1xi1>, vector<8x1xf32>
    %c0_74 = arith.constant 0 : index
    %c0_75 = arith.constant 0 : index
    %152 = vector.load %arg5[%c0_74, %c0_75] : memref<8x1xf32, #tpu.memory_space<vmem>>, vector<8x1xf32>
    tpu.vector_store %arg5[%c0_74, %c0_75], %151 {strides = array<i32>} : memref<8x1xf32, #tpu.memory_space<vmem>>, vector<8x1xf32>,
    return
  }
  func.func @transform_0(%arg0: i32, %arg1: memref<16xi32, #tpu.memory_space<smem>>) -> (i32, i32) {
    %c0_i32 = arith.constant 0 : i32
    %c0_i32_0 = arith.constant 0 : i32
    return %arg0, %c0_i32 : i32, i32
  }
  func.func @transform_2(%arg0: i32, %arg1: memref<16xi32, #tpu.memory_space<smem>>) -> (i32, i32) {
    %c0_i32 = arith.constant 0 : i32
    %c0_i32_0 = arith.constant 0 : i32
    return %arg0, %c0_i32 : i32, i32
  }
  func.func @transform_3(%arg0: i32, %arg1: memref<16xi32, #tpu.memory_space<smem>>) -> (i32, i32) {
    %c0_i32 = arith.constant 0 : i32
    %c0_i32_0 = arith.constant 0 : i32
    return %arg0, %c0_i32 : i32, i32
  }
}

</mosaic_0001>

<llo_original>
// kernel: tpu_custom_call.1
$region0: #{tpu_custom_call.1}
  #allocation0 [shape = 'u32[]', space=smem, size = 0x4, offset = 0x4, fixed_abs, tag = 'smem constant byte address 0x4 - core index']
  #allocation1 [shape = 'u32[144,128]{1,0:T(1,128)}', space=vmem, size = 0x12000, scoped, tag = 'internal scratch']
  #allocation2 [shape = 'f32[8,128]{1,0:T(8,128)}', space=vmem, size = 0x1000, scoped, tag = 'scratch operand']
  #allocation3 [shape = 's32[8]{0}', space=sflag, size = 0x20, scoped, tag = 'scratch operand']
  #allocation4 [shape = 's32[1]{0}', space=sflag, size = 0x4, scoped, tag = 'scoped memory for tpu_custom_call.1']
  #allocation5 [shape = 'u8[512]{0}', space=smem, size = 0x200, scoped, tag = 'prefetched SMEM operand 0']
  #allocation8 [shape = 's32[]', space=sflag, size = 0x4, offset = 0, fixed_abs, tag = 'sflag constant byte address 0x0 - dummy sync flag']
  #allocation9 [shape = 's32[]', space=sflag, size = 0x4, offset = 0, fixed_abs, tag = 'sflag constant byte address 0x0 - dummy sync flag']
  #allocation10 [shape = 'u32[]', space=smem, size = 0x4, offset = 0x44, fixed_abs, tag = 'smem constant byte address 0x44 - assertion arg 0']
  #allocation11 [shape = 'u32[]', space=smem, size = 0x4, offset = 0x48, fixed_abs, tag = 'smem constant byte address 0x48 - assertion arg 1']
  #allocation12 [shape = 's32[]', space=sflag, size = 0x4, offset = 0, fixed_abs, tag = 'sflag constant byte address 0x0 - dummy sync flag']
  #allocation13 [shape = 's32[]', space=sflag, size = 0x4, offset = 0, fixed_abs, tag = 'sflag constant byte address 0x0 - dummy sync flag']
  #allocation14 [shape = 's32[]', space=sflag, size = 0x4, offset = 0, fixed_abs, tag = 'sflag constant byte address 0x0 - dummy sync flag']
  #allocation15 [shape = 's32[]', space=sflag, size = 0x4, offset = 0, fixed_abs, tag = 'sflag constant byte address 0x0 - dummy sync flag']
  #allocation16 [shape = 's32[]', space=sflag, size = 0x4, offset = 0, fixed_abs, tag = 'sflag constant byte address 0x0 - dummy sync flag']
  #allocation17 [shape = 's32[]', space=sflag, size = 0x4, offset = 0, fixed_abs, tag = 'sflag constant byte address 0x0 - dummy sync flag']
  #allocation18 [shape = 's32[]', space=sflag, size = 0x4, offset = 0, fixed_abs, tag = 'sflag constant byte address 0x0 - dummy sync flag']
  #allocation19 [shape = 's32[]', space=sflag, size = 0x4, offset = 0, fixed_abs, tag = 'sflag constant byte address 0x0 - dummy sync flag']
  #allocation20 [shape = 's32[]', space=sflag, size = 0x4, offset = 0, fixed_abs, tag = 'sflag constant byte address 0x0 - dummy sync flag']
  #allocation21 [shape = 's32[]', space=sflag, size = 0x4, offset = 0, fixed_abs, tag = 'sflag constant byte address 0x0 - dummy sync flag']
  #allocation22 [shape = 's32[]', space=sflag, size = 0x4, offset = 0, fixed_abs, tag = 'sflag constant byte address 0x0 - dummy sync flag']
  #allocation23 [shape = 's32[]', space=sflag, size = 0x4, offset = 0, fixed_abs, tag = 'sflag constant byte address 0x0 - dummy sync flag']
  #allocation24 [shape = 's32[]', space=sflag, size = 0x4, offset = 0, fixed_abs, tag = 'sflag constant byte address 0x0 - dummy sync flag']
  #allocation25 [shape = 's32[]', space=sflag, size = 0x4, offset = 0, fixed_abs, tag = 'sflag constant byte address 0x0 - dummy sync flag']
  %s0 = inlined_call_operand.vmem [shape: s32[16], index: 0, kind: input, shape index: {}]
  %s1 = inlined_call_operand.vmem [shape: s32[16,1], index: 1, kind: input, shape index: {}]
  %s2 = inlined_call_operand.hbm [shape: f32[128,128], index: 2, kind: input, shape index: {}]
  %s3 = inlined_call_operand.hbm [shape: f32[16,128], index: 3, kind: output, shape index: {0}]
  %s4 = inlined_call_operand.vmem [shape: f32[16,1], index: 4, kind: output, shape index: {1}]
  %5 = xla_tuple %s3, %s4
  %s6 = sld [smem:[#allocation0]]
  $region77: #{tpu_custom_call.1} parent=0
    _
  %s8 = ssub.s32 1, %s6
  %s9 = scalar_select 0, %s8, %s6
  %s10 = sshll.u32 %s0, 4
  %s11 = int_to_ptr.vmem [resolvable:$true] %s10
  %13 = dma.vmem_to_smem %s11, 16, [#allocation5], [#allocation4]
  %14 = dma.done [#allocation4], 16
  %15 = sfence
  $region1: #{tpu_custom_call.1} parent=0
    #allocation6 [shape = 'u8[8192]{0}', space=vmem, size = 0x2000, scoped, tag = 'output window, operand 0']
    #allocation7 [shape = 's32[2]{0}', space=sflag, size = 0x8, scoped, tag = 'scoped memory for tpu_custom_call.1']
    %16 = vsyncpa [#allocation7], 0
    %s17 = scalar_lea.sflag [#allocation7], 1
    %18 = vsyncpa %s17, 0
    loop: start=0, step=1, limit=4
    $region2: #{tpu_custom_call.1} parent=1 // loop_pre_header
      _
    $region3: #{tpu_custom_call.1} parent=1 // loop_header
      %s20 = sphi 0, %s24
      %p21 = scmp.ge.s32.totalorder %s20, 4
      %s30 = sphi 0, %s32
      %s33 = sphi 0, %s30
      %s34 = sphi 0, %s33
      %s50 = sphi 0, %s34
      %s56 = sphi 0, %s58
      %s59 = sphi 0, %s56
      %s60 = sphi 0, %s59
      %s76 = sphi 0, %s60
      %s82 = sphi 0, %s84
      %s85 = sphi 0, %s82
      %s86 = sphi 0, %s85
      %s102 = sphi 0, %s86
    $region4: #{tpu_custom_call.1} parent=1 // loop_header_branch
      %23 = sbr.rel (%p21) target = $region8
    $region5: #{tpu_custom_call.1} parent=1 // loop_body
      %s25 = ssub.s32 %s20, 1
      %s26 = ssub.s32 %s20, 2
      %s27 = sadd.s32 %s20, 1
      %s28 = ssub.s32 %s20, %s27
      %p29 = scmp.eq.s32.totalorder %s28, 0
      %s31 = sadd.s32 %s30, 1
      %s32 = scalar_select %p29, %s30, %s31
      %p35 = pneg %p29
      %p36 = scmp.eq.s32.totalorder %s20, 1
      %p37 = por %p35, %p36
      %p38 = scmp.ne.s32.totalorder %s30, %s33
      %p39 = scmp.eq.s32.totalorder %s20, 0
      %p40 = por %p38, %p39
      %p41 = scmp.ne.s32.totalorder %s30, %s33
      %p42 = scmp.eq.s32.totalorder %s25, 1
      %p43 = por %p41, %p42
      %p44 = scmp.ne.s32.totalorder %s33, %s34
      %p45 = scmp.eq.s32.totalorder %s25, 0
      %p46 = por %p44, %p45
      %p47 = scmp.ne.s32.totalorder %s33, %s34
      %p48 = scmp.eq.s32.totalorder %s26, 1
      %p49 = por %p47, %p48
      %p51 = scmp.ne.s32.totalorder %s34, %s50
      %p52 = scmp.eq.s32.totalorder %s26, 0
      %p53 = por %p51, %p52
      %s54 = ssub.s32 %s20, %s27
      %p55 = scmp.eq.s32.totalorder %s54, 0
      %s57 = sadd.s32 %s56, 1
      %s58 = scalar_select %p55, %s56, %s57
      %p61 = pneg %p55
      %p62 = scmp.eq.s32.totalorder %s20, 1
      %p63 = por %p61, %p62
      %p64 = scmp.ne.s32.totalorder %s56, %s59
      %p65 = scmp.eq.s32.totalorder %s20, 0
      %p66 = por %p64, %p65
      %p67 = scmp.ne.s32.totalorder %s56, %s59
      %p68 = scmp.eq.s32.totalorder %s25, 1
      %p69 = por %p67, %p68
      %p70 = scmp.ne.s32.totalorder %s59, %s60
      %p71 = scmp.eq.s32.totalorder %s25, 0
      %p72 = por %p70, %p71
      %p73 = scmp.ne.s32.totalorder %s59, %s60
      %p74 = scmp.eq.s32.totalorder %s26, 1
      %p75 = por %p73, %p74
      %p77 = scmp.ne.s32.totalorder %s60, %s76
      %p78 = scmp.eq.s32.totalorder %s26, 0
      %p79 = por %p77, %p78
      %s80 = ssub.s32 %s20, %s27
      %p81 = scmp.eq.s32.totalorder %s80, 0
      %s83 = sadd.s32 %s82, 1
      %s84 = scalar_select %p81, %s82, %s83
      %p87 = pneg %p81
      %p88 = scmp.eq.s32.totalorder %s20, 1
      %p89 = por %p87, %p88
      %p90 = scmp.ne.s32.totalorder %s82, %s85
      %p91 = scmp.eq.s32.totalorder %s20, 0
      %p92 = por %p90, %p91
      %p93 = scmp.ne.s32.totalorder %s82, %s85
      %p94 = scmp.eq.s32.totalorder %s25, 1
      %p95 = por %p93, %p94
      %p96 = scmp.ne.s32.totalorder %s85, %s86
      %p97 = scmp.eq.s32.totalorder %s25, 0
      %p98 = por %p96, %p97
      %p99 = scmp.ne.s32.totalorder %s85, %s86
      %p100 = scmp.eq.s32.totalorder %s26, 1
      %p101 = por %p99, %p100
      %p103 = scmp.ne.s32.totalorder %s86, %s102
      %p104 = scmp.eq.s32.totalorder %s26, 0
      %p105 = por %p103, %p104
      %p106 = scmp.le.s32.totalorder 1, %s20
      %p107 = scmp.lt.s32.totalorder %s20, 3
      %p108 = pnand %p106, %p107
      %p109 = pneg %p108
      // Predicated region
      $region9: #{tpu_custom_call.1} parent=5 // pred_check
        _
      $region10: #{tpu_custom_call.1} parent=5 // pred_check_branch
        %111 = sbr.rel (%p108) target = $region12
      $region11: #{tpu_custom_call.1} parent=5 // pred_region
        %s112 = ssub.s32 %s20, 1
      $region12: #{tpu_custom_call.1} parent=5 // pred_fallthru
        _
      %p113 = scmp.lt.s32.totalorder %s20, 2
      // Predicated region
      $region13: #{tpu_custom_call.1} parent=5 // pred_check
        %p114 = pneg %p113
      $region14: #{tpu_custom_call.1} parent=5 // pred_check_branch
        %116 = sbr.rel (%p114) target = $region16
      $region15: #{tpu_custom_call.1} parent=5 // pred_region
        // Predicated region
        $region17: #{tpu_custom_call.1} parent=15 // pred_check
          %p117 = pneg %p40
        $region18: #{tpu_custom_call.1} parent=15 // pred_check_branch
          %119 = sbr.rel (%p117) target = $region20
        $region19: #{tpu_custom_call.1} parent=15 // pred_region
          %p120 = scmp.lt.s32.totalorder %s20, 1
          %s121 = scalar_select %p120, %s20, 1
          %s122 = smul.addr %s121, 8
          %s123 = scalar_lea.vmem %s1, %s122
        $region20: #{tpu_custom_call.1} parent=15 // pred_fallthru
          _
      $region16: #{tpu_custom_call.1} parent=5 // pred_fallthru
        _
      %p124 = scmp.le.s32.totalorder 1, %s20
      %p125 = scmp.lt.s32.totalorder %s20, 3
      %p126 = pnand %p124, %p125
      %p127 = pneg %p126
      // Predicated region
      $region21: #{tpu_custom_call.1} parent=5 // pred_check
        _
      $region22: #{tpu_custom_call.1} parent=5 // pred_check_branch
        %129 = sbr.rel (%p126) target = $region24
      $region23: #{tpu_custom_call.1} parent=5 // pred_region
        %s130 = ssub.s32 %s20, 1
        %p131 = scmp.lt.s32.totalorder %s25, 1
        %s132 = scalar_select %p131, %s25, 1
        %s133 = smul.addr %s132, 8
        %s134 = scalar_lea.vmem %s1, %s133
        %p135 = pneg %p46
        %p136 = pneg %p43
        %p137 = pneg %p72
        %p138 = pneg %p69
        %s139 = sand.u32 %s59, 1
        %s140 = scalar_lea.sflag [#allocation7], %s139
        %s141 = sand.u32 %s59, 1
        %s142 = smul.addr %s141, 8
        %s143 = scalar_lea.vmem [#allocation6], %s142
        %p144 = pneg %p98
        %p145 = pneg %p95
        %p146 = scmp.lt.s32.totalorder %s25, 1
        %s147 = scalar_select %p146, %s25, 1
        %s148 = smul.addr %s147, 8
        %s149 = scalar_lea.vmem %s4, %s148
        %p150 = scmp.lt.s32.totalorder %s25, 1
        %s151 = scalar_select %p150, %s25, 1
        %s152 = smul.addr %s151, 8
        %s153 = scalar_lea.vmem %s1, %s152
        %p154 = scmp.lt.s32.totalorder %s25, 1
        %s155 = scalar_select %p154, %s25, 1
        %s156 = smul.addr %s155, 8
        %s157 = scalar_lea.vmem %s4, %s156
        %s158 = smul.u32 %s25, 8
        %s159 = sld [smem:[#allocation5 + %s158]]
        %s160 = smul.addr %s159, 16
        %s161 = scalar_lea.hbm %s2, %s160
        // Predicated region
        $region25: #{tpu_custom_call.1} parent=23 // pred_check
          _
        $region26: #{tpu_custom_call.1} parent=23 // pred_check_branch
          %163 = sbr.rel target = $region28
        $region27: #{tpu_custom_call.1} parent=23 // pred_region
          %164 = sst [smem:[#allocation10]] [#allocation9]
          %165 = sst [smem:[#allocation11]] [#allocation8]
        $region28: #{tpu_custom_call.1} parent=23 // pred_fallthru
          _
        %167 = shalt.err (0)
        %s169 = sshll.u32 [#allocation2], 4
        %s170 = int_to_ptr.vmem [resolvable:$true] %s169
        %172 = dma.hbm_to_vmem [thread:$0]  %s161, 16, %s170, [#allocation3]
        %s173 = sadd.s32 %s158, 1
        %s174 = sld [smem:[#allocation5 + %s173]]
        %s175 = smul.addr %s174, 16
        %s176 = scalar_lea.hbm %s2, %s175
        %s177 = scalar_lea.vmem [#allocation2], 1
        %s178 = scalar_lea.sflag [#allocation3], 1
        // Predicated region
        $region29: #{tpu_custom_call.1} parent=23 // pred_check
          _
        $region30: #{tpu_custom_call.1} parent=23 // pred_check_branch
          %180 = sbr.rel target = $region32
        $region31: #{tpu_custom_call.1} parent=23 // pred_region
          %181 = sst [smem:[#allocation10]] [#allocation13]
          %182 = sst [smem:[#allocation11]] [#allocation12]
        $region32: #{tpu_custom_call.1} parent=23 // pred_fallthru
          _
        %184 = shalt.err (0)
        %s186 = sshll.u32 %s177, 4
        %s187 = int_to_ptr.vmem [resolvable:$true] %s186
        %189 = dma.hbm_to_vmem [thread:$0]  %s176, 16, %s187, %s178
        %s190 = sadd.s32 %s158, 2
        %s191 = sld [smem:[#allocation5 + %s190]]
        %s192 = smul.addr %s191, 16
        %s193 = scalar_lea.hbm %s2, %s192
        %s194 = scalar_lea.vmem [#allocation2], 2
        %s195 = scalar_lea.sflag [#allocation3], 2
        // Predicated region
        $region33: #{tpu_custom_call.1} parent=23 // pred_check
          _
        $region34: #{tpu_custom_call.1} parent=23 // pred_check_branch
          %197 = sbr.rel target = $region36
        $region35: #{tpu_custom_call.1} parent=23 // pred_region
          %198 = sst [smem:[#allocation10]] [#allocation15]
          %199 = sst [smem:[#allocation11]] [#allocation14]
        $region36: #{tpu_custom_call.1} parent=23 // pred_fallthru
          _
        %201 = shalt.err (0)
        %s203 = sshll.u32 %s194, 4
        %s204 = int_to_ptr.vmem [resolvable:$true] %s203
        %206 = dma.hbm_to_vmem [thread:$0]  %s193, 16, %s204, %s195
        %s207 = sadd.s32 %s158, 3
        %s208 = sld [smem:[#allocation5 + %s207]]
        %s209 = smul.addr %s208, 16
        %s210 = scalar_lea.hbm %s2, %s209
        %s211 = scalar_lea.vmem [#allocation2], 3
        %s212 = scalar_lea.sflag [#allocation3], 3
        // Predicated region
        $region37: #{tpu_custom_call.1} parent=23 // pred_check
          _
        $region38: #{tpu_custom_call.1} parent=23 // pred_check_branch
          %214 = sbr.rel target = $region40
        $region39: #{tpu_custom_call.1} parent=23 // pred_region
          %215 = sst [smem:[#allocation10]] [#allocation17]
          %216 = sst [smem:[#allocation11]] [#allocation16]
        $region40: #{tpu_custom_call.1} parent=23 // pred_fallthru
          _
        %218 = shalt.err (0)
        %s220 = sshll.u32 %s211, 4
        %s221 = int_to_ptr.vmem [resolvable:$true] %s220
        %223 = dma.hbm_to_vmem [thread:$0]  %s210, 16, %s221, %s212
        %s224 = sadd.s32 %s158, 4
        %s225 = sld [smem:[#allocation5 + %s224]]
        %s226 = smul.addr %s225, 16
        %s227 = scalar_lea.hbm %s2, %s226
        %s228 = scalar_lea.vmem [#allocation2], 4
        %s229 = scalar_lea.sflag [#allocation3], 4
        // Predicated region
        $region41: #{tpu_custom_call.1} parent=23 // pred_check
          _
        $region42: #{tpu_custom_call.1} parent=23 // pred_check_branch
          %231 = sbr.rel target = $region44
        $region43: #{tpu_custom_call.1} parent=23 // pred_region
          %232 = sst [smem:[#allocation10]] [#allocation19]
          %233 = sst [smem:[#allocation11]] [#allocation18]
        $region44: #{tpu_custom_call.1} parent=23 // pred_fallthru
          _
        %235 = shalt.err (0)
        %s237 = sshll.u32 %s228, 4
        %s238 = int_to_ptr.vmem [resolvable:$true] %s237
        %240 = dma.hbm_to_vmem [thread:$0]  %s227, 16, %s238, %s229
        %s241 = sadd.s32 %s158, 5
        %s242 = sld [smem:[#allocation5 + %s241]]
        %s243 = smul.addr %s242, 16
        %s244 = scalar_lea.hbm %s2, %s243
        %s245 = scalar_lea.vmem [#allocation2], 5
        %s246 = scalar_lea.sflag [#allocation3], 5
        // Predicated region
        $region45: #{tpu_custom_call.1} parent=23 // pred_check
          _
        $region46: #{tpu_custom_call.1} parent=23 // pred_check_branch
          %248 = sbr.rel target = $region48
        $region47: #{tpu_custom_call.1} parent=23 // pred_region
          %249 = sst [smem:[#allocation10]] [#allocation21]
          %250 = sst [smem:[#allocation11]] [#allocation20]
        $region48: #{tpu_custom_call.1} parent=23 // pred_fallthru
          _
        %252 = shalt.err (0)
        %s254 = sshll.u32 %s245, 4
        %s255 = int_to_ptr.vmem [resolvable:$true] %s254
        %257 = dma.hbm_to_vmem [thread:$0]  %s244, 16, %s255, %s246
        %s258 = sadd.s32 %s158, 6
        %s259 = sld [smem:[#allocation5 + %s258]]
        %s260 = smul.addr %s259, 16
        %s261 = scalar_lea.hbm %s2, %s260
        %s262 = scalar_lea.vmem [#allocation2], 6
        %s263 = scalar_lea.sflag [#allocation3], 6
        // Predicated region
        $region49: #{tpu_custom_call.1} parent=23 // pred_check
          _
        $region50: #{tpu_custom_call.1} parent=23 // pred_check_branch
          %265 = sbr.rel target = $region52
        $region51: #{tpu_custom_call.1} parent=23 // pred_region
          %266 = sst [smem:[#allocation10]] [#allocation23]
          %267 = sst [smem:[#allocation11]] [#allocation22]
        $region52: #{tpu_custom_call.1} parent=23 // pred_fallthru
          _
        %269 = shalt.err (0)
        %s271 = sshll.u32 %s262, 4
        %s272 = int_to_ptr.vmem [resolvable:$true] %s271
        %274 = dma.hbm_to_vmem [thread:$0]  %s261, 16, %s272, %s263
        %s275 = sadd.s32 %s158, 7
        %s276 = sld [smem:[#allocation5 + %s275]]
        %s277 = smul.addr %s276, 16
        %s278 = scalar_lea.hbm %s2, %s277
        %s279 = scalar_lea.vmem [#allocation2], 7
        %s280 = scalar_lea.sflag [#allocation3], 7
        // Predicated region
        $region53: #{tpu_custom_call.1} parent=23 // pred_check
          _
        $region54: #{tpu_custom_call.1} parent=23 // pred_check_branch
          %282 = sbr.rel target = $region56
        $region55: #{tpu_custom_call.1} parent=23 // pred_region
          %283 = sst [smem:[#allocation10]] [#allocation25]
          %284 = sst [smem:[#allocation11]] [#allocation24]
        $region56: #{tpu_custom_call.1} parent=23 // pred_fallthru
          _
        %286 = shalt.err (0)
        %s288 = sshll.u32 %s279, 4
        %s289 = int_to_ptr.vmem [resolvable:$true] %s288
        %291 = dma.hbm_to_vmem [thread:$0]  %s278, 16, %s289, %s280
        %293 = dma.done [#allocation3], 16
        %295 = dma.done %s178, 16
        %297 = dma.done %s195, 16
        %299 = dma.done %s212, 16
        %301 = dma.done %s229, 16
        %303 = dma.done %s246, 16
        %305 = dma.done %s263, 16
        %307 = dma.done %s280, 16
        %v308 = vld [vmem:[#allocation2] sm:$0xff]
        %309 = vst [vmem:[%s143] sm:$0xff] %v308
        %v310 = vlaneseq
        %v311 = vand.u32 %v310, 127
        %vm312 = vcmp.lt.s32.totalorder %v311, 65
        %v313 = vsel %vm312, %v308, -1e+30
        %314 = vmax.xlane.f32.xlu0 %v313
        %v315 = vpop.xlane.xlu0 %314
        %v316 = vsub.f32 %v313, %v315
        %v317 = vmul.f32 %v316, 1.442695
        %v318 = vpow.pop %v317
        %319 = vadd.xlane.f32.xlu0 %v318
        %v320 = vpop.xlane.xlu0 %319
        %v321 = vlog2.pop %v320
        %v322 = vmul.f32 %v321, 0.6931472
        %v323 = vadd.f32 %v315, %v322
        %v324 = vld [vmem:[%s153] sm:$0xff]
        %325 = vset.pattern.permute.xlu0 0
        %326 = vperm.xlu0 %325, %v324
        %v327 = vpop.permute.xlu0 %326
        %vm328 = vcmp.eq.s32.totalorder %v311, %v327
        %v329 = vsel %vm328, %v308, 0.0
        %330 = vadd.xlane.f32.xlu0 %v329
        %v331 = vpop.xlane.xlu0 %330
        %v332 = vlaneseq
        %v333 = vshrl.u32 %v332, 7
        %v334 = vstv %s158
        %v335 = vadd.s32 %v334, %v333
        %vm336 = vcmp.lt.s32.totalorder %v335, 16
        %v337 = vsub.f32 %v323, %v331
        %v338 = vsel %vm336, %v337, 0.0
        %vm339 = vcmask 7168
        %340 = vst.msk [vmem:[%s157] sm:$0xff] %vm339, %v338
        %s341 = sand.u32 %s59, 1
        %s342 = scalar_lea.sflag [#allocation7], %s341
        %s343 = sand.u32 %s59, 1
        %s344 = smul.addr %s343, 8
        %s345 = scalar_lea.vmem [#allocation6], %s344
        %p346 = scmp.lt.s32.totalorder %s25, 1
        %s347 = scalar_select %p346, %s25, 1
        %s348 = smul.addr %s347, 8
        %s349 = scalar_lea.vmem %s4, %s348
        // Predicated region
        $region57: #{tpu_custom_call.1} parent=23 // pred_check
          %p350 = pneg %p69
        $region58: #{tpu_custom_call.1} parent=23 // pred_check_branch
          %352 = sbr.rel (%p350) target = $region60
        $region59: #{tpu_custom_call.1} parent=23 // pred_region
          %s354 = ssub.s32 128, 128
          %355 = vsyncadd %s342, %s354
          %s356 = smul.addr %s25, 128
          %s357 = scalar_lea.hbm %s3, %s356
          %s359 = sshll.u32 %s345, 4
          %s360 = int_to_ptr.vmem [resolvable:$true] %s359
          %362 = dma.vmem_to_hbm [thread:$0]  %s360, 128, %s357, %s342
        $region60: #{tpu_custom_call.1} parent=23 // pred_fallthru
          _
        // Predicated region
        $region61: #{tpu_custom_call.1} parent=23 // pred_check
          %p363 = pneg %p95
        $region62: #{tpu_custom_call.1} parent=23 // pred_check_branch
          %365 = sbr.rel (%p363) target = $region64
        $region63: #{tpu_custom_call.1} parent=23 // pred_region
          _
        $region64: #{tpu_custom_call.1} parent=23 // pred_fallthru
          _
      $region24: #{tpu_custom_call.1} parent=5 // pred_fallthru
        _
      %p366 = scmp.le.s32.totalorder 2, %s20
      // Predicated region
      $region65: #{tpu_custom_call.1} parent=5 // pred_check
        %p367 = pneg %p366
      $region66: #{tpu_custom_call.1} parent=5 // pred_check_branch
        %369 = sbr.rel (%p367) target = $region68
      $region67: #{tpu_custom_call.1} parent=5 // pred_region
        %s370 = ssub.s32 %s20, 2
        // Predicated region
        $region69: #{tpu_custom_call.1} parent=67 // pred_check
          %p371 = pneg %p75
        $region70: #{tpu_custom_call.1} parent=67 // pred_check_branch
          %373 = sbr.rel (%p371) target = $region72
        $region71: #{tpu_custom_call.1} parent=67 // pred_region
          %s374 = sand.u32 %s60, 1
          %s375 = scalar_lea.sflag [#allocation7], %s374
          %s376 = sand.u32 %s60, 1
          %s377 = smul.addr %s376, 8
          %s378 = scalar_lea.vmem [#allocation6], %s377
          %379 = dma.done %s375, 128
        $region72: #{tpu_custom_call.1} parent=67 // pred_fallthru
          _
        // Predicated region
        $region73: #{tpu_custom_call.1} parent=67 // pred_check
          %p380 = pneg %p101
        $region74: #{tpu_custom_call.1} parent=67 // pred_check_branch
          %382 = sbr.rel (%p380) target = $region76
        $region75: #{tpu_custom_call.1} parent=67 // pred_region
          %p383 = scmp.lt.s32.totalorder %s26, 1
          %s384 = scalar_select %p383, %s26, 1
          %s385 = smul.addr %s384, 8
          %s386 = scalar_lea.vmem %s4, %s385
        $region76: #{tpu_custom_call.1} parent=67 // pred_fallthru
          _
      $region68: #{tpu_custom_call.1} parent=5 // pred_fallthru
        _
    $region6: #{tpu_custom_call.1} parent=1 // loop_footer
      %s24 = sadd.s32 1, %s20
    $region7: #{tpu_custom_call.1} parent=1 // loop_footer_branch
      %19 = sbr.rel target = $region3
    $region8: #{tpu_custom_call.1} parent=1 // loop_exit
      _
    %387 = vsyncpa [#allocation7], 1
    %s388 = scalar_lea.sflag [#allocation7], 1
    %389 = vsyncpa %s388, 1
  %390 = vsyncmov [#allocation3]
  %s391 = vpop.sfrf %390
  %p392 = scmp.eq.s32.totalorder %s391, 0
  %p393 = pneg %p392
  %395 = shalt.err (%p393)
  %s396 = scalar_lea.sflag [#allocation3], 1
  %397 = vsyncmov %s396
  %s398 = vpop.sfrf %397
  %p399 = scmp.eq.s32.totalorder %s398, 0
  %p400 = pneg %p399
  %402 = shalt.err (%p400)
  %s403 = scalar_lea.sflag [#allocation3], 2
  %404 = vsyncmov %s403
  %s405 = vpop.sfrf %404
  %p406 = scmp.eq.s32.totalorder %s405, 0
  %p407 = pneg %p406
  %409 = shalt.err (%p407)
  %s410 = scalar_lea.sflag [#allocation3], 3
  %411 = vsyncmov %s410
  %s412 = vpop.sfrf %411
  %p413 = scmp.eq.s32.totalorder %s412, 0
  %p414 = pneg %p413
  %416 = shalt.err (%p414)
  %s417 = scalar_lea.sflag [#allocation3], 4
  %418 = vsyncmov %s417
  %s419 = vpop.sfrf %418
  %p420 = scmp.eq.s32.totalorder %s419, 0
  %p421 = pneg %p420
  %423 = shalt.err (%p421)
  %s424 = scalar_lea.sflag [#allocation3], 5
  %425 = vsyncmov %s424
  %s426 = vpop.sfrf %425
  %p427 = scmp.eq.s32.totalorder %s426, 0
  %p428 = pneg %p427
  %430 = shalt.err (%p428)
  %s431 = scalar_lea.sflag [#allocation3], 6
  %432 = vsyncmov %s431
  %s433 = vpop.sfrf %432
  %p434 = scmp.eq.s32.totalorder %s433, 0
  %p435 = pneg %p434
  %437 = shalt.err (%p435)
  %s438 = scalar_lea.sflag [#allocation3], 7
  %439 = vsyncmov %s438
  %s440 = vpop.sfrf %439
  %p441 = scmp.eq.s32.totalorder %s440, 0
  %p442 = pneg %p441
  %444 = shalt.err (%p442)

</llo_original>
